<compile_context>
chip_gen: v7x
topology: tpu7x:2x2x1
jax: 0.10.0
libtpu: 0.0.40
codegen_flags: <defaults>
</compile_context>

<pallas_src>
import functools

import numpy as np
import jax
import jax.numpy as jnp
from jax.experimental import pallas as pl
from jax.experimental.pallas import tpu as pltpu

FIXED_GENERATOR = True
GDIM = 512
FEATURE_LEN = 16688


def _round_up(x, m):
    return ((x + m - 1) // m) * m


# --------------------------------------------------------------------------
# Kernel 1: elementwise add (the actual forward path, FIXED_GENERATOR=True)
# Whole (B, F) arrays are ~130 KiB each -> single full-array VMEM block.
# This path is launch-overhead bound; keeping it a single simple block is
# already optimal to within a few microseconds.
# --------------------------------------------------------------------------
def _add_kernel(noise_ref, real_ref, out_ref):
    out_ref[...] = noise_ref[...] + real_ref[...]


def fixed_generator_forward(noise, real_data):
    return pl.pallas_call(
        _add_kernel,
        out_shape=jax.ShapeDtypeStruct(noise.shape, noise.dtype),
    )(noise, real_data)


# --------------------------------------------------------------------------
# Kernel 2: tiled Linear (+ fused activation) for the non-fixed MLP path
#   y = x @ W_packed + b ; activation in {None, "relu", "tanh"}
# W_packed is pre-transposed/padded/bf16 (K_pad, N_pad), prepared at init.
# Grid: (N_tiles, K_tiles); K (reduction) is the last, "arbitrary" axis;
# an f32 VMEM accumulator is resident across K (init/finalize via pl.when).
# --------------------------------------------------------------------------
def _linear_kernel(x_ref, w_ref, b_ref, o_ref, acc_ref, *, activation):
    k = pl.program_id(1)

    @pl.when(k == 0)
    def _():
        acc_ref[...] = jnp.zeros_like(acc_ref)

    # Cast activations to the (bf16) weight dtype so the MXU runs a native
    # bf16 x bf16 -> f32 matmul; accumulate in f32 scratch.
    x_tile = x_ref[...].astype(w_ref.dtype)
    acc_ref[...] += jnp.dot(x_tile, w_ref[...],
                            preferred_element_type=jnp.float32)

    @pl.when(k == pl.num_programs(1) - 1)
    def _():
        y = acc_ref[...] + b_ref[...]
        if activation == "relu":
            y = jnp.maximum(y, 0.0)
        elif activation == "tanh":
            y = jnp.tanh(y)
        o_ref[...] = y.astype(o_ref.dtype)


def pallas_linear_packed(x, w_packed, b_packed, activation, *, tn, tk):
    """x: (B_pad, K_pad) f32, w_packed: (K_pad, N_pad) bf16 (pre-transposed,
    zero-padded), b_packed: (1, N_pad) f32  ->  (B_pad, N_pad) f32."""
    B, K_pad = x.shape
    Kw, N_pad = w_packed.shape
    assert Kw == K_pad and K_pad % tk == 0 and N_pad % tn == 0

    grid = (N_pad // tn, K_pad // tk)

    return pl.pallas_call(
        functools.partial(_linear_kernel, activation=activation),
        out_shape=jax.ShapeDtypeStruct((B, N_pad), jnp.float32),
        grid_spec=pltpu.PrefetchScalarGridSpec(
            num_scalar_prefetch=0,
            grid=grid,
            in_specs=[
                pl.BlockSpec((B, tk), lambda j, k: (0, k)),   # activation tile
                pl.BlockSpec((tk, tn), lambda j, k: (k, j)),  # bf16 W tile
                pl.BlockSpec((1, tn), lambda j, k: (0, j)),   # bias tile
            ],
            out_specs=pl.BlockSpec((B, tn), lambda j, k: (0, j)),
            scratch_shapes=[pltpu.VMEM((B, tn), jnp.float32)],
        ),
        compiler_params=pltpu.CompilerParams(
            dimension_semantics=("parallel", "arbitrary"),
            vmem_limit_bytes=48 << 20,
        ),
    )(x, w_packed, b_packed)


# --------------------------------------------------------------------------
# Parameters: torch-style init (f32, (N, K)) + one-time packing for the
# kernels (transpose, zero-pad to tile multiples, cast weights to bf16).
# --------------------------------------------------------------------------
LAYER_DIMS = [
    (FEATURE_LEN, GDIM),
    (GDIM, GDIM),
    (GDIM, GDIM),
    (GDIM, FEATURE_LEN),
]
LAYER_ACTS = ("relu", "relu", "tanh", None)
# (tn, tk) per layer: big streamed tiles on the 512x16688 layers; tn=256 on
# the N=512 layers so the parallel (N) grid axis has >=2 blocks for megacore.
LAYER_TILES = [(256, 4224), (256, 512), (256, 512), (4224, 512)]


def init_generator_params(key):
    """Deterministic torch.nn.Linear-style init; returns f32 (N,K)/(N,) pairs."""
    params = []
    for fan_in, fan_out in LAYER_DIMS:
        key, kw, kb = jax.random.split(key, 3)
        bound = 1.0 / float(np.sqrt(fan_in))
        w = jax.random.uniform(
            kw, (fan_out, fan_in), jnp.float32, minval=-bound, maxval=bound
        )
        b = jax.random.uniform(
            kb, (fan_out,), jnp.float32, minval=-bound, maxval=bound
        )
        params.append((w, b))
    return params


def pack_generator_params(params, weight_dtype=jnp.bfloat16):
    """One-time layout work: W -> (K_pad, N_pad) weight_dtype (zero-padded so
    the K accumulation stays exact), bias -> (1, N_pad) f32."""
    packed = []
    for (w, b), act, (tn, tk) in zip(params, LAYER_ACTS, LAYER_TILES):
        n_out, k_in = w.shape
        K_pad = _round_up(k_in, tk)
        N_pad = _round_up(n_out, tn)
        w_p = jnp.pad(
            w.T.astype(weight_dtype), ((0, K_pad - k_in), (0, N_pad - n_out))
        )
        b_p = jnp.pad(b.astype(jnp.float32), (0, N_pad - n_out)).reshape(1, N_pad)
        packed.append(
            dict(w=w_p, b=b_p, activation=act, tn=tn, tk=tk, n_out=n_out)
        )
    return packed


def generator_mlp_forward(packed_params, noise):
    B, F = noise.shape
    B_pad = _round_up(max(B, 8), 8)          # pad tiny batch to full sublanes once
    K_pad0 = packed_params[0]["w"].shape[0]
    h = jnp.pad(noise, ((0, B_pad - B), (0, K_pad0 - F)))
    for layer in packed_params:
        assert h.shape[1] == layer["w"].shape[0]
        h = pallas_linear_packed(
            h, layer["w"], layer["b"], layer["activation"],
            tn=layer["tn"], tk=layer["tk"],
        )
    return h[:B, : packed_params[-1]["n_out"]]


def generator_forward(packed_params, noise, real_data):
    if FIXED_GENERATOR:
        return fixed_generator_forward(noise, real_data)
    return generator_mlp_forward(packed_params, noise)


# --------------------------------------------------------------------------
if __name__ == "__main__":
    key = jax.random.PRNGKey(0)
    k_noise, k_real, k_params = jax.random.split(key, 3)

    batch = 2
    noise = jax.random.normal(k_noise, (batch, FEATURE_LEN), jnp.float32)
    real_data = jax.random.normal(k_real, (batch, FEATURE_LEN), jnp.float32)

    params = init_generator_params(k_params)          # f32, torch layout (ref)
    packed_params = pack_generator_params(params)     # bf16, kernel layout

    # Actual forward semantics (FIXED_GENERATOR=True): noise + real_data.
    out = generator_forward(packed_params, noise, real_data)
    out = jax.block_until_ready(out)
    np.testing.assert_allclose(
        np.asarray(out), np.asarray(noise + real_data), rtol=1e-6, atol=1e-6
    )

    # Also exercise the (unused-in-forward) MLP branch kernels for sanity.
    mlp_out = jax.block_until_ready(generator_mlp_forward(packed_params, noise))

    def _ref_linear(x, w, b, act):
        y = jnp.dot(x, w.T, precision=jax.lax.Precision.HIGHEST) + b
        if act == "relu":
            y = jnp.maximum(y, 0.0)
        elif act == "tanh":
            y = jnp.tanh(y)
        return y

    ref = noise
    for (w, b), act in zip(params, LAYER_ACTS):
        ref = _ref_linear(ref, w, b, act)
    # bf16 weights/activations in the matmul (f32 accumulation) -> loose tol.
    np.testing.assert_allclose(
        np.asarray(mlp_out), np.asarray(ref), rtol=3e-2, atol=3e-2
    )

    print("KERNEL_OK")
</pallas_src>

<mosaic_0001>
module attributes {stable_mosaic.version = 11 : i64} {
  func.func @_add_kernel(%arg0: memref<2x16688xf32, #tpu.memory_space<vmem>>, %arg1: memref<2x16688xf32, #tpu.memory_space<vmem>>, %arg2: memref<2x16688xf32, #tpu.memory_space<vmem>>) attributes {dimension_semantics = [], scalar_prefetch = 0 : i64, scratch_operands = 0 : i64, tpu.core_type = #tpu.core_type<tc>} {
    %c0 = arith.constant 0 : index
    %c0_0 = arith.constant 0 : index
    %0 = vector.load %arg0[%c0, %c0_0] : memref<2x16688xf32, #tpu.memory_space<vmem>>, vector<2x16688xf32>
    %c0_1 = arith.constant 0 : index
    %c0_2 = arith.constant 0 : index
    %1 = vector.load %arg1[%c0_1, %c0_2] : memref<2x16688xf32, #tpu.memory_space<vmem>>, vector<2x16688xf32>
    %2 = arith.addf %0, %1 : vector<2x16688xf32>
    %c0_3 = arith.constant 0 : index
    %c0_4 = arith.constant 0 : index
    %3 = vector.load %arg2[%c0_3, %c0_4] : memref<2x16688xf32, #tpu.memory_space<vmem>>, vector<2x16688xf32>
    tpu.vector_store %arg2[%c0_3, %c0_4], %2 {strides = array<i32>} : memref<2x16688xf32, #tpu.memory_space<vmem>>, vector<2x16688xf32>,
    return
  }
}

</mosaic_0001>

<llo_original>
// kernel: tpu_custom_call.1
$region0: #{tpu_custom_call.1}
  #allocation0 [shape = 'u32[]', space=smem, size = 0x4, offset = 0x4, fixed_abs, tag = 'smem constant byte address 0x4 - core index']
  #allocation1 [shape = 'u32[144,128]{1,0:T(1,128)}', space=vmem, size = 0x12000, scoped, tag = 'internal scratch']
  %s0 = inlined_call_operand.hbm [shape: f32[2,16688], index: 0, kind: input, shape index: {}]
  %s1 = inlined_call_operand.hbm [shape: f32[2,16688], index: 1, kind: input, shape index: {}]
  %s2 = inlined_call_operand.hbm [shape: f32[2,16688], index: 2, kind: output, shape index: {}]
  %s3 = sld [smem:[#allocation0]]
  $region26: #{tpu_custom_call.1} parent=0
    _
  %s5 = ssub.s32 1, %s3
  %s6 = scalar_select 0, %s5, %s3
  $region1: #{tpu_custom_call.1} parent=0
    #allocation2 [shape = 'u8[134144]{0}', space=vmem, size = 0x20c00, scoped, tag = 'input window, operand 0, single buffered']
    #allocation3 [shape = 's32[1]{0}', space=sflag, size = 0x4, scoped, tag = 'scoped memory for tpu_custom_call.1']
    #allocation4 [shape = 's32[1]{0}', space=sflag, size = 0x4, scoped, tag = 'scoped memory for tpu_custom_call.1']
    #allocation5 [shape = 'u8[134144]{0}', space=vmem, size = 0x20c00, scoped, tag = 'input window, operand 1, single buffered']
    #allocation6 [shape = 's32[1]{0}', space=sflag, size = 0x4, scoped, tag = 'scoped memory for tpu_custom_call.1']
    #allocation7 [shape = 'u8[134144]{0}', space=vmem, size = 0x20c00, scoped, tag = 'output window, operand 0, single buffered']
    %7 = vsyncpa [#allocation3], 0
    %8 = vsyncpa [#allocation6], 0
    %9 = vsyncpa [#allocation4], 0
    // Predicated region
    $region2: #{tpu_custom_call.1} parent=1 // pred_check
      _
    $region3: #{tpu_custom_call.1} parent=1 // pred_check_branch
      %11 = sbr.rel (0) target = $region5
    $region4: #{tpu_custom_call.1} parent=1 // pred_region
      %s13 = ssub.s32 4192, 4192
      %14 = vsyncadd [#allocation3], %s13
      %s16 = sshll.u32 [#allocation2], 4
      %s17 = int_to_ptr.vmem [resolvable:$true] %s16
      %19 = dma.hbm_to_vmem [thread:$0]  %s0, 4192, %s17, [#allocation3]
    $region5: #{tpu_custom_call.1} parent=1 // pred_fallthru
      _
    // Predicated region
    $region6: #{tpu_custom_call.1} parent=1 // pred_check
      _
    $region7: #{tpu_custom_call.1} parent=1 // pred_check_branch
      %21 = sbr.rel (0) target = $region9
    $region8: #{tpu_custom_call.1} parent=1 // pred_region
      %s23 = ssub.s32 4192, 4192
      %24 = vsyncadd [#allocation6], %s23
      %s26 = sshll.u32 [#allocation5], 4
      %s27 = int_to_ptr.vmem [resolvable:$true] %s26
      %29 = dma.hbm_to_vmem [thread:$0]  %s1, 4192, %s27, [#allocation6]
    $region9: #{tpu_custom_call.1} parent=1 // pred_fallthru
      _
    // Predicated region
    $region10: #{tpu_custom_call.1} parent=1 // pred_check
      _
    $region11: #{tpu_custom_call.1} parent=1 // pred_check_branch
      %31 = sbr.rel (0) target = $region13
    $region12: #{tpu_custom_call.1} parent=1 // pred_region
      %32 = dma.done [#allocation3], 4192
    $region13: #{tpu_custom_call.1} parent=1 // pred_fallthru
      _
    // Predicated region
    $region14: #{tpu_custom_call.1} parent=1 // pred_check
      _
    $region15: #{tpu_custom_call.1} parent=1 // pred_check_branch
      %34 = sbr.rel (0) target = $region17
    $region16: #{tpu_custom_call.1} parent=1 // pred_region
      %35 = dma.done [#allocation6], 4192
    $region17: #{tpu_custom_call.1} parent=1 // pred_fallthru
      _
    %v36 = vld [vmem:[#allocation2] sm:$0xff]
    %v37 = vld [vmem:[#allocation2 + $0x8] sm:$0xff]
    %v38 = vld [vmem:[#allocation2 + $0x10] sm:$0xff]
    %v39 = vld [vmem:[#allocation2 + $0x18] sm:$0xff]
    %v40 = vld [vmem:[#allocation2 + $0x20] sm:$0xff]
    %v41 = vld [vmem:[#allocation2 + $0x28] sm:$0xff]
    %v42 = vld [vmem:[#allocation2 + $0x30] sm:$0xff]
    %v43 = vld [vmem:[#allocation2 + $0x38] sm:$0xff]
    %v44 = vld [vmem:[#allocation2 + $0x40] sm:$0xff]
    %v45 = vld [vmem:[#allocation2 + $0x48] sm:$0xff]
    %v46 = vld [vmem:[#allocation2 + $0x50] sm:$0xff]
    %v47 = vld [vmem:[#allocation2 + $0x58] sm:$0xff]
    %v48 = vld [vmem:[#allocation2 + $0x60] sm:$0xff]
    %v49 = vld [vmem:[#allocation2 + $0x68] sm:$0xff]
    %v50 = vld [vmem:[#allocation2 + $0x70] sm:$0xff]
    %v51 = vld [vmem:[#allocation2 + $0x78] sm:$0xff]
    %v52 = vld [vmem:[#allocation2 + $0x80] sm:$0xff]
    %v53 = vld [vmem:[#allocation2 + $0x88] sm:$0xff]
    %v54 = vld [vmem:[#allocation2 + $0x90] sm:$0xff]
    %v55 = vld [vmem:[#allocation2 + $0x98] sm:$0xff]
    %v56 = vld [vmem:[#allocation2 + $0xa0] sm:$0xff]
    %v57 = vld [vmem:[#allocation2 + $0xa8] sm:$0xff]
    %v58 = vld [vmem:[#allocation2 + $0xb0] sm:$0xff]
    %v59 = vld [vmem:[#allocation2 + $0xb8] sm:$0xff]
    %v60 = vld [vmem:[#allocation2 + $0xc0] sm:$0xff]
    %v61 = vld [vmem:[#allocation2 + $0xc8] sm:$0xff]
    %v62 = vld [vmem:[#allocation2 + $0xd0] sm:$0xff]
    %v63 = vld [vmem:[#allocation2 + $0xd8] sm:$0xff]
    %v64 = vld [vmem:[#allocation2 + $0xe0] sm:$0xff]
    %v65 = vld [vmem:[#allocation2 + $0xe8] sm:$0xff]
    %v66 = vld [vmem:[#allocation2 + $0xf0] sm:$0xff]
    %v67 = vld [vmem:[#allocation2 + $0xf8] sm:$0xff]
    %v68 = vld [vmem:[#allocation2 + $0x100] sm:$0x3f]
    %v69 = vld [vmem:[#allocation5] sm:$0xff]
    %v70 = vld [vmem:[#allocation5 + $0x8] sm:$0xff]
    %v71 = vld [vmem:[#allocation5 + $0x10] sm:$0xff]
    %v72 = vld [vmem:[#allocation5 + $0x18] sm:$0xff]
    %v73 = vld [vmem:[#allocation5 + $0x20] sm:$0xff]
    %v74 = vld [vmem:[#allocation5 + $0x28] sm:$0xff]
    %v75 = vld [vmem:[#allocation5 + $0x30] sm:$0xff]
    %v76 = vld [vmem:[#allocation5 + $0x38] sm:$0xff]
    %v77 = vld [vmem:[#allocation5 + $0x40] sm:$0xff]
    %v78 = vld [vmem:[#allocation5 + $0x48] sm:$0xff]
    %v79 = vld [vmem:[#allocation5 + $0x50] sm:$0xff]
    %v80 = vld [vmem:[#allocation5 + $0x58] sm:$0xff]
    %v81 = vld [vmem:[#allocation5 + $0x60] sm:$0xff]
    %v82 = vld [vmem:[#allocation5 + $0x68] sm:$0xff]
    %v83 = vld [vmem:[#allocation5 + $0x70] sm:$0xff]
    %v84 = vld [vmem:[#allocation5 + $0x78] sm:$0xff]
    %v85 = vld [vmem:[#allocation5 + $0x80] sm:$0xff]
    %v86 = vld [vmem:[#allocation5 + $0x88] sm:$0xff]
    %v87 = vld [vmem:[#allocation5 + $0x90] sm:$0xff]
    %v88 = vld [vmem:[#allocation5 + $0x98] sm:$0xff]
    %v89 = vld [vmem:[#allocation5 + $0xa0] sm:$0xff]
    %v90 = vld [vmem:[#allocation5 + $0xa8] sm:$0xff]
    %v91 = vld [vmem:[#allocation5 + $0xb0] sm:$0xff]
    %v92 = vld [vmem:[#allocation5 + $0xb8] sm:$0xff]
    %v93 = vld [vmem:[#allocation5 + $0xc0] sm:$0xff]
    %v94 = vld [vmem:[#allocation5 + $0xc8] sm:$0xff]
    %v95 = vld [vmem:[#allocation5 + $0xd0] sm:$0xff]
    %v96 = vld [vmem:[#allocation5 + $0xd8] sm:$0xff]
    %v97 = vld [vmem:[#allocation5 + $0xe0] sm:$0xff]
    %v98 = vld [vmem:[#allocation5 + $0xe8] sm:$0xff]
    %v99 = vld [vmem:[#allocation5 + $0xf0] sm:$0xff]
    %v100 = vld [vmem:[#allocation5 + $0xf8] sm:$0xff]
    %v101 = vld [vmem:[#allocation5 + $0x100] sm:$0x3f]
    %v102 = vadd.f32 %v36, %v69
    %v103 = vadd.f32 %v37, %v70
    %v104 = vadd.f32 %v38, %v71
    %v105 = vadd.f32 %v39, %v72
    %v106 = vadd.f32 %v40, %v73
    %v107 = vadd.f32 %v41, %v74
    %v108 = vadd.f32 %v42, %v75
    %v109 = vadd.f32 %v43, %v76
    %v110 = vadd.f32 %v44, %v77
    %v111 = vadd.f32 %v45, %v78
    %v112 = vadd.f32 %v46, %v79
    %v113 = vadd.f32 %v47, %v80
    %v114 = vadd.f32 %v48, %v81
    %v115 = vadd.f32 %v49, %v82
    %v116 = vadd.f32 %v50, %v83
    %v117 = vadd.f32 %v51, %v84
    %v118 = vadd.f32 %v52, %v85
    %v119 = vadd.f32 %v53, %v86
    %v120 = vadd.f32 %v54, %v87
    %v121 = vadd.f32 %v55, %v88
    %v122 = vadd.f32 %v56, %v89
    %v123 = vadd.f32 %v57, %v90
    %v124 = vadd.f32 %v58, %v91
    %v125 = vadd.f32 %v59, %v92
    %v126 = vadd.f32 %v60, %v93
    %v127 = vadd.f32 %v61, %v94
    %v128 = vadd.f32 %v62, %v95
    %v129 = vadd.f32 %v63, %v96
    %v130 = vadd.f32 %v64, %v97
    %v131 = vadd.f32 %v65, %v98
    %v132 = vadd.f32 %v66, %v99
    %v133 = vadd.f32 %v67, %v100
    %v134 = vadd.f32 %v68, %v101
    %135 = vst [vmem:[#allocation7] sm:$0xff] %v102
    %136 = vst [vmem:[#allocation7 + $0x8] sm:$0xff] %v103
    %137 = vst [vmem:[#allocation7 + $0x10] sm:$0xff] %v104
    %138 = vst [vmem:[#allocation7 + $0x18] sm:$0xff] %v105
    %139 = vst [vmem:[#allocation7 + $0x20] sm:$0xff] %v106
    %140 = vst [vmem:[#allocation7 + $0x28] sm:$0xff] %v107
    %141 = vst [vmem:[#allocation7 + $0x30] sm:$0xff] %v108
    %142 = vst [vmem:[#allocation7 + $0x38] sm:$0xff] %v109
    %143 = vst [vmem:[#allocation7 + $0x40] sm:$0xff] %v110
    %144 = vst [vmem:[#allocation7 + $0x48] sm:$0xff] %v111
    %145 = vst [vmem:[#allocation7 + $0x50] sm:$0xff] %v112
    %146 = vst [vmem:[#allocation7 + $0x58] sm:$0xff] %v113
    %147 = vst [vmem:[#allocation7 + $0x60] sm:$0xff] %v114
    %148 = vst [vmem:[#allocation7 + $0x68] sm:$0xff] %v115
    %149 = vst [vmem:[#allocation7 + $0x70] sm:$0xff] %v116
    %150 = vst [vmem:[#allocation7 + $0x78] sm:$0xff] %v117
    %151 = vst [vmem:[#allocation7 + $0x80] sm:$0xff] %v118
    %152 = vst [vmem:[#allocation7 + $0x88] sm:$0xff] %v119
    %153 = vst [vmem:[#allocation7 + $0x90] sm:$0xff] %v120
    %154 = vst [vmem:[#allocation7 + $0x98] sm:$0xff] %v121
    %155 = vst [vmem:[#allocation7 + $0xa0] sm:$0xff] %v122
    %156 = vst [vmem:[#allocation7 + $0xa8] sm:$0xff] %v123
    %157 = vst [vmem:[#allocation7 + $0xb0] sm:$0xff] %v124
    %158 = vst [vmem:[#allocation7 + $0xb8] sm:$0xff] %v125
    %159 = vst [vmem:[#allocation7 + $0xc0] sm:$0xff] %v126
    %160 = vst [vmem:[#allocation7 + $0xc8] sm:$0xff] %v127
    %161 = vst [vmem:[#allocation7 + $0xd0] sm:$0xff] %v128
    %162 = vst [vmem:[#allocation7 + $0xd8] sm:$0xff] %v129
    %163 = vst [vmem:[#allocation7 + $0xe0] sm:$0xff] %v130
    %164 = vst [vmem:[#allocation7 + $0xe8] sm:$0xff] %v131
    %165 = vst [vmem:[#allocation7 + $0xf0] sm:$0xff] %v132
    %166 = vst [vmem:[#allocation7 + $0xf8] sm:$0xff] %v133
    %vm167 = vcmask 1041408
    %vm168 = vcmask 1043458
    %vm169 = vmor %vm168, %vm167
    %vm170 = vcmask 390148
    %vm171 = vmor %vm170, %vm169
    %172 = vst.msk [vmem:[#allocation7 + $0x100] sm:$0x3f] %vm171, %v134
    // Predicated region
    $region18: #{tpu_custom_call.1} parent=1 // pred_check
      _
    $region19: #{tpu_custom_call.1} parent=1 // pred_check_branch
      %174 = sbr.rel (0) target = $region21
    $region20: #{tpu_custom_call.1} parent=1 // pred_region
      %s176 = ssub.s32 4192, 4192
      %177 = vsyncadd [#allocation4], %s176
      %s179 = sshll.u32 [#allocation7], 4
      %s180 = int_to_ptr.vmem [resolvable:$true] %s179
      %182 = dma.vmem_to_hbm [thread:$0]  %s180, 4192, %s2, [#allocation4]
    $region21: #{tpu_custom_call.1} parent=1 // pred_fallthru
      _
    // Predicated region
    $region22: #{tpu_custom_call.1} parent=1 // pred_check
      _
    $region23: #{tpu_custom_call.1} parent=1 // pred_check_branch
      %184 = sbr.rel (0) target = $region25
    $region24: #{tpu_custom_call.1} parent=1 // pred_region
      %185 = dma.done [#allocation4], 4192
    $region25: #{tpu_custom_call.1} parent=1 // pred_fallthru
      _
    %186 = vsyncpa [#allocation3], 1
    %187 = vsyncpa [#allocation6], 1
    %188 = vsyncpa [#allocation4], 1

</llo_original>
